<compile_context>
chip_gen: v6e
topology: v6e:2x2x1
jax: 0.10.0
libtpu: 0.0.40
codegen_flags: <defaults>
</compile_context>

<pallas_src>
import functools

import jax
import jax.numpy as jnp
from jax.experimental import pallas as pl
from jax.experimental.pallas import tpu as pltpu


# ---------------------------------------------------------------------------
# Sizing helpers
# ---------------------------------------------------------------------------

def _vmem_capacity_bytes():
    """Best-effort per-TensorCore VMEM capacity; conservative when unknown."""
    try:
        kind = jax.devices()[0].device_kind.lower()
    except Exception:
        kind = ""
    if "v5" in kind or "v6" in kind:
        return 128 << 20          # v5e/v5p/v6e: 128 MiB VMEM per TensorCore
    return 64 << 20               # v7x (64 MiB / TC) and anything unknown


def _vmem_budget():
    cap = _vmem_capacity_bytes()
    budget = cap // 2                                   # bytes for pipelined buffers
    vmem_limit = int(min(cap - (4 << 20), budget + (16 << 20)))
    return budget, vmem_limit


def _row_step(itemsize):
    # Native packed sublane tile: 8 rows (f32), 16 (bf16), 32 (int8/fp8).
    return 8 * max(1, 4 // int(itemsize))


def _divisor_tiles(n, step, cap):
    """Ascending multiples of `step` that divide `n` and are <= cap."""
    out = []
    k = step
    cap = min(cap, n)
    while k <= cap:
        if n % k == 0:
            out.append(k)
        k += step
    return out


def _pick_tile(n, step, cap, prefer_split=True):
    cands = _divisor_tiles(n, step, cap)
    if not cands:
        return step                       # n is padded to a multiple of step
    if prefer_split:
        split = [c for c in cands if n // c >= 2]
        if split:
            return split[-1]
    return cands[-1]


# ---------------------------------------------------------------------------
# Kernels
# ---------------------------------------------------------------------------

def _fused_se_kernel(x_ref, w1_ref, b1_ref, w2_ref, b2_ref, o_ref, *, inv_s, bb):
    """Single-read SE: pool + excite + scale on a resident (bb, C, Sp) block."""
    for i in range(bb):                                           # bb is small & static
        xi = x_ref[i]                                             # (C, Sp)
        pooled = jnp.sum(xi, axis=-1, keepdims=True,
                         dtype=jnp.float32) * inv_s               # (C, 1) f32 mean
        h = jnp.dot(w1_ref[...], pooled,
                    preferred_element_type=jnp.float32) + b1_ref[...]   # (Cr, 1)
        h = jnp.maximum(h, 0.0)
        z = jnp.dot(w2_ref[...], h,
                    preferred_element_type=jnp.float32) + b2_ref[...]   # (C, 1)
        scale = jax.nn.sigmoid(z).astype(o_ref.dtype)             # (C, 1)
        o_ref[i] = xi * scale                                     # lane broadcast


def _pool_sum_kernel(x_ref, sum_ref, acc_ref):
    """Per-row f32 sums; lane-dense VPU accumulation, one XLU reduce at the end."""
    @pl.when(pl.program_id(1) == 0)
    def _():
        acc_ref[...] = jnp.zeros_like(acc_ref)

    x = x_ref[...]
    part = acc_ref[...]
    for j in range(x.shape[-1] // 128):                           # static unroll
        part = part + x[:, j * 128:(j + 1) * 128].astype(jnp.float32)
    acc_ref[...] = part

    @pl.when(pl.program_id(1) == pl.num_programs(1) - 1)
    def _():
        sum_ref[...] = jnp.sum(acc_ref[...], axis=-1, keepdims=True)


def _scale_kernel(x_ref, scale_ref, o_ref):
    """Streaming multiply of a lane-dense (tr, ts) tile by its (tr, 1) scale."""
    o_ref[...] = x_ref[...] * scale_ref[...]


# ---------------------------------------------------------------------------
# Wrapper
# ---------------------------------------------------------------------------

def channel_se_layer_3d(x, w1, b1, w2, b2, *, force_two_pass=False):
    """x: (B, C, D, H, W); w1: (Cr, C); b1: (Cr,); w2: (C, Cr); b2: (C,)."""
    B, C, D, H, W = x.shape
    S = D * H * W
    Cr = w1.shape[0]
    itemsize = int(jnp.dtype(x.dtype).itemsize)
    inv_s = 1.0 / float(S)

    budget, vmem_limit = _vmem_budget()
    block_budget = budget // 4            # input (x2) + output (x2) double-buffers

    # Pad the spatial axis to a lane multiple (zeros are exact for the sums).
    s_pad = -S % 128
    Sp = S + s_pad
    x3 = x.reshape(B, C, S)
    if s_pad:
        x3 = jnp.pad(x3, ((0, 0), (0, 0), (0, s_pad)))

    fused_row_bytes = C * Sp * itemsize

    # ---------------- Fused single-read fast path ----------------
    if (not force_two_pass) and fused_row_bytes <= block_budget:
        bb_cands = [b for b in range(1, min(B, 8) + 1)
                    if B % b == 0 and b * fused_row_bytes <= block_budget]
        split = [b for b in bb_cands if B // b >= 2]   # feed both v7x TensorCores
        bb = max(split) if split else max(bb_cands)
        grid = (B // bb,)

        w1f = w1.astype(jnp.float32)
        b1f = b1.reshape(Cr, 1).astype(jnp.float32)
        w2f = w2.astype(jnp.float32)
        b2f = b2.reshape(C, 1).astype(jnp.float32)

        out3 = pl.pallas_call(
            functools.partial(_fused_se_kernel, inv_s=inv_s, bb=bb),
            out_shape=jax.ShapeDtypeStruct((B, C, Sp), x.dtype),
            grid_spec=pltpu.PrefetchScalarGridSpec(
                num_scalar_prefetch=0,
                grid=grid,
                in_specs=[
                    pl.BlockSpec((bb, C, Sp), lambda b: (b, 0, 0)),
                    pl.BlockSpec((Cr, C), lambda b: (0, 0)),
                    pl.BlockSpec((Cr, 1), lambda b: (0, 0)),
                    pl.BlockSpec((C, Cr), lambda b: (0, 0)),
                    pl.BlockSpec((C, 1), lambda b: (0, 0)),
                ],
                out_specs=pl.BlockSpec((bb, C, Sp), lambda b: (b, 0, 0)),
            ),
            compiler_params=pltpu.CompilerParams(
                dimension_semantics=("parallel",),
                vmem_limit_bytes=vmem_limit),
        )(x3, w1f, b1f, w2f, b2f)

        out3 = out3[:, :, :S] if s_pad else out3
        return out3.reshape(B, C, D, H, W)

    # ---------------- Two-pass streaming fallback ----------------
    R = B * C
    step = _row_step(itemsize)
    r_pad = -R % step
    Rp = R + r_pad

    x2 = x3.reshape(R, Sp)
    if r_pad:
        x2 = jnp.pad(x2, ((0, r_pad), (0, 0)))

    tr = _pick_tile(Rp, step, 256, prefer_split=True)
    lane_cap = block_budget // max(1, tr * itemsize)
    lane_cap = max(128, min(4096, (lane_cap // 128) * 128))
    ts = _pick_tile(Sp, 128, lane_cap, prefer_split=False)
    grid = (Rp // tr, Sp // ts)

    # Pass 1: per-(batch*channel) spatial sums, f32 accumulation across S tiles.
    sums = pl.pallas_call(
        _pool_sum_kernel,
        out_shape=jax.ShapeDtypeStruct((Rp, 1), jnp.float32),
        grid_spec=pltpu.PrefetchScalarGridSpec(
            num_scalar_prefetch=0,
            grid=grid,
            in_specs=[pl.BlockSpec((tr, ts), lambda r, s: (r, s))],
            out_specs=pl.BlockSpec((tr, 1), lambda r, s: (r, 0)),
            scratch_shapes=[pltpu.VMEM((tr, 128), jnp.float32)],
        ),
        compiler_params=pltpu.CompilerParams(
            dimension_semantics=("parallel", "arbitrary"),
            vmem_limit_bytes=vmem_limit),
    )(x2)

    # Excitation: tiny matmuls, plain XLA (no pallas_call launch overhead).
    pooled = sums[:R, 0].reshape(B, C) * inv_s
    h = jax.nn.relu(pooled @ w1.astype(jnp.float32).T + b1.astype(jnp.float32))
    scale = jax.nn.sigmoid(h @ w2.astype(jnp.float32).T + b2.astype(jnp.float32))
    scale_col = scale.reshape(R, 1).astype(x.dtype)               # pre-cast in wrapper
    if r_pad:
        scale_col = jnp.pad(scale_col, ((0, r_pad), (0, 0)))

    # Pass 2: stream x again and apply the per-channel scale (default buffering).
    out2 = pl.pallas_call(
        _scale_kernel,
        out_shape=jax.ShapeDtypeStruct((Rp, Sp), x.dtype),
        grid_spec=pltpu.PrefetchScalarGridSpec(
            num_scalar_prefetch=0,
            grid=grid,
            in_specs=[
                pl.BlockSpec((tr, ts), lambda r, s: (r, s)),
                pl.BlockSpec((tr, 1), lambda r, s: (r, 0)),
            ],
            out_specs=pl.BlockSpec((tr, ts), lambda r, s: (r, s)),
        ),
        compiler_params=pltpu.CompilerParams(
            dimension_semantics=("parallel", "parallel"),
            vmem_limit_bytes=vmem_limit),
    )(x2, scale_col)

    if r_pad or s_pad:
        out2 = out2[:R, :S]
    return out2.reshape(B, C, D, H, W)


# ---------------------------------------------------------------------------
# Reference + test driver
# ---------------------------------------------------------------------------

def _reference(x, w1, b1, w2, b2):
    """Pure-JAX reference matching the PyTorch forward."""
    pooled = jnp.mean(x.astype(jnp.float32), axis=(2, 3, 4))                 # (B, C)
    h = jax.nn.relu(pooled @ w1.astype(jnp.float32).T + b1.astype(jnp.float32))
    s = jax.nn.sigmoid(h @ w2.astype(jnp.float32).T + b2.astype(jnp.float32))
    return (x.astype(jnp.float32) * s[:, :, None, None, None]).astype(x.dtype)


if __name__ == "__main__":
    B, C, D, H, W = 2, 8, 4, 8, 8
    reduction_ratio = 2
    Cr = C // reduction_ratio

    key = jax.random.PRNGKey(0)
    kx, kw1, kb1, kw2, kb2, kx2 = jax.random.split(key, 6)

    x = jax.random.normal(kx, (B, C, D, H, W), dtype=jnp.float32)

    # Deterministic init mimicking nn.Linear default (uniform +/- 1/sqrt(fan_in)).
    bound1 = 1.0 / float(C) ** 0.5
    w1 = jax.random.uniform(kw1, (Cr, C), jnp.float32, -bound1, bound1)
    b1 = jax.random.uniform(kb1, (Cr,), jnp.float32, -bound1, bound1)
    bound2 = 1.0 / float(Cr) ** 0.5
    w2 = jax.random.uniform(kw2, (C, Cr), jnp.float32, -bound2, bound2)
    b2 = jax.random.uniform(kb2, (C,), jnp.float32, -bound2, bound2)

    ref = _reference(x, w1, b1, w2, b2)

    # 1) Fused single-read path (default at these shapes).
    fused = jax.jit(channel_se_layer_3d)
    out = jax.block_until_ready(fused(x, w1, b1, w2, b2))
    assert out.shape == (B, C, D, H, W)
    assert jnp.allclose(out, ref, atol=1e-5, rtol=1e-5), "fused path mismatch"

    # 2) Two-pass streaming path (used for very large volumes) — exercised here too.
    two_pass = jax.jit(functools.partial(channel_se_layer_3d, force_two_pass=True))
    out2 = jax.block_until_ready(two_pass(x, w1, b1, w2, b2))
    assert jnp.allclose(out2, ref, atol=1e-5, rtol=1e-5), "two-pass path mismatch"

    # 3) Non-lane-aligned spatial shape -> exercises the zero-padding path.
    x_odd = jax.random.normal(kx2, (B, C, 3, 5, 7), dtype=jnp.float32)
    ref_odd = _reference(x_odd, w1, b1, w2, b2)
    out_odd = jax.block_until_ready(jax.jit(channel_se_layer_3d)(x_odd, w1, b1, w2, b2))
    assert jnp.allclose(out_odd, ref_odd, atol=1e-5, rtol=1e-5), "padded path mismatch"

    print("KERNEL_OK")
</pallas_src>

<mosaic_0001>
module attributes {stable_mosaic.version = 11 : i64} {
  func.func @_fused_se_kernel(%arg0: i32, %arg1: memref<1x8x256xf32, #tpu.memory_space<vmem>>, %arg2: memref<4x8xf32, #tpu.memory_space<vmem>>, %arg3: memref<4x1xf32, #tpu.memory_space<vmem>>, %arg4: memref<8x4xf32, #tpu.memory_space<vmem>>, %arg5: memref<8x1xf32, #tpu.memory_space<vmem>>, %arg6: memref<1x8x256xf32, #tpu.memory_space<vmem>>) attributes {dimension_semantics = [#tpu.dimension_semantics<parallel>], iteration_bounds = array<i64: 2>, scalar_prefetch = 0 : i64, scratch_operands = 0 : i64, tpu.core_type = #tpu.core_type<tc>, window_params = [{transform_indices = @transform_0, window_bounds = array<i64: 1, 8, 256>}, {pipeline_mode = #tpu.pipeline_mode<synchronous>, transform_indices = @transform_1, window_bounds = array<i64: 4, 8>}, {pipeline_mode = #tpu.pipeline_mode<synchronous>, transform_indices = @transform_2, window_bounds = array<i64: 4, 1>}, {pipeline_mode = #tpu.pipeline_mode<synchronous>, transform_indices = @transform_3, window_bounds = array<i64: 8, 4>}, {pipeline_mode = #tpu.pipeline_mode<synchronous>, transform_indices = @transform_4, window_bounds = array<i64: 8, 1>}, {transform_indices = @transform_5, window_bounds = array<i64: 1, 8, 256>}]} {
    %c0 = arith.constant 0 : index
    %c0_0 = arith.constant 0 : index
    %c0_1 = arith.constant 0 : index
    %0 = vector.load %arg1[%c0, %c0_0, %c0_1] : memref<1x8x256xf32, #tpu.memory_space<vmem>>, vector<1x8x256xf32>
    %1 = vector.shape_cast %0 : vector<1x8x256xf32> to vector<8x256xf32>
    %cst = arith.constant dense<0.000000e+00> : vector<8xf32>
    %2 = vector.multi_reduction <add>, %1, %cst [1] : vector<8x256xf32> to vector<8xf32>
    %3 = vector.shape_cast %2 : vector<8xf32> to vector<8x1xf32>
    %cst_2 = arith.constant 3.906250e-03 : f32
    %4 = vector.broadcast %cst_2 : f32 to vector<8x1xf32>
    %5 = arith.mulf %3, %4 : vector<8x1xf32>
    %c0_3 = arith.constant 0 : index
    %c0_4 = arith.constant 0 : index
    %6 = vector.load %arg2[%c0_3, %c0_4] : memref<4x8xf32, #tpu.memory_space<vmem>>, vector<4x8xf32>
    %cst_5 = arith.constant dense<0.000000e+00> : vector<4x1xf32>
    %7 = tpu.matmul %6, %5, %cst_5 {dimension_numbers = #tpu.dot_dimension_numbers<[1], [0], [0], [1], [0, 0, 1, 1], [], []>} : vector<4x8xf32>, vector<8x1xf32>, vector<4x1xf32> -> vector<4x1xf32>
    %c0_6 = arith.constant 0 : index
    %c0_7 = arith.constant 0 : index
    %8 = vector.load %arg3[%c0_6, %c0_7] : memref<4x1xf32, #tpu.memory_space<vmem>>, vector<4x1xf32>
    %9 = arith.addf %7, %8 : vector<4x1xf32>
    %cst_8 = arith.constant 0.000000e+00 : f32
    %10 = vector.broadcast %cst_8 : f32 to vector<4x1xf32>
    %11 = arith.maximumf %9, %10 : vector<4x1xf32>
    %c0_9 = arith.constant 0 : index
    %c0_10 = arith.constant 0 : index
    %12 = vector.load %arg4[%c0_9, %c0_10] : memref<8x4xf32, #tpu.memory_space<vmem>>, vector<8x4xf32>
    %cst_11 = arith.constant dense<0.000000e+00> : vector<8x1xf32>
    %13 = tpu.matmul %12, %11, %cst_11 {dimension_numbers = #tpu.dot_dimension_numbers<[1], [0], [0], [1], [0, 0, 1, 1], [], []>} : vector<8x4xf32>, vector<4x1xf32>, vector<8x1xf32> -> vector<8x1xf32>
    %c0_12 = arith.constant 0 : index
    %c0_13 = arith.constant 0 : index
    %14 = vector.load %arg5[%c0_12, %c0_13] : memref<8x1xf32, #tpu.memory_space<vmem>>, vector<8x1xf32>
    %15 = arith.addf %13, %14 : vector<8x1xf32>
    %16 = arith.negf %15 : vector<8x1xf32>
    %17 = math.exp %16 : vector<8x1xf32>
    %cst_14 = arith.constant 1.000000e+00 : f32
    %18 = vector.broadcast %cst_14 : f32 to vector<8x1xf32>
    %19 = arith.addf %18, %17 : vector<8x1xf32>
    %20 = arith.divf %18, %19 : vector<8x1xf32>
    %21 = vector.broadcast %20 : vector<8x1xf32> to vector<8x256xf32>
    %22 = arith.mulf %1, %21 : vector<8x256xf32>
    %c0_15 = arith.constant 0 : index
    %c0_16 = arith.constant 0 : index
    %c0_17 = arith.constant 0 : index
    %23 = vector.load %arg6[%c0_15, %c0_16, %c0_17] : memref<1x8x256xf32, #tpu.memory_space<vmem>>, vector<1x8x256xf32>
    %24 = vector.shape_cast %23 : vector<1x8x256xf32> to vector<8x256xf32>
    %25 = vector.shape_cast %22 : vector<8x256xf32> to vector<1x8x256xf32>
    tpu.vector_store %arg6[%c0_15, %c0_16, %c0_17], %25 {strides = array<i32>} : memref<1x8x256xf32, #tpu.memory_space<vmem>>, vector<1x8x256xf32>,
    return
  }
  func.func @transform_0(%arg0: i32) -> (i32, i32, i32) {
    %c0_i32 = arith.constant 0 : i32
    %c0_i32_0 = arith.constant 0 : i32
    %c0_i32_1 = arith.constant 0 : i32
    return %arg0, %c0_i32, %c0_i32_0 : i32, i32, i32
  }
  func.func @transform_1(%arg0: i32) -> (i32, i32) {
    %c0_i32 = arith.constant 0 : i32
    %c0_i32_0 = arith.constant 0 : i32
    %c0_i32_1 = arith.constant 0 : i32
    return %c0_i32, %c0_i32_0 : i32, i32
  }
  func.func @transform_2(%arg0: i32) -> (i32, i32) {
    %c0_i32 = arith.constant 0 : i32
    %c0_i32_0 = arith.constant 0 : i32
    %c0_i32_1 = arith.constant 0 : i32
    return %c0_i32, %c0_i32_0 : i32, i32
  }
  func.func @transform_3(%arg0: i32) -> (i32, i32) {
    %c0_i32 = arith.constant 0 : i32
    %c0_i32_0 = arith.constant 0 : i32
    %c0_i32_1 = arith.constant 0 : i32
    return %c0_i32, %c0_i32_0 : i32, i32
  }
  func.func @transform_4(%arg0: i32) -> (i32, i32) {
    %c0_i32 = arith.constant 0 : i32
    %c0_i32_0 = arith.constant 0 : i32
    %c0_i32_1 = arith.constant 0 : i32
    return %c0_i32, %c0_i32_0 : i32, i32
  }
  func.func @transform_5(%arg0: i32) -> (i32, i32, i32) {
    %c0_i32 = arith.constant 0 : i32
    %c0_i32_0 = arith.constant 0 : i32
    %c0_i32_1 = arith.constant 0 : i32
    return %arg0, %c0_i32, %c0_i32_0 : i32, i32, i32
  }
}

</mosaic_0001>

<llo_original>
// kernel: channel_se_layer_3d.1
$region0: #{channel_se_layer_3d.1}
  #allocation0 [shape = 'u32[]', space=smem, size = 0x4, offset = 0x4, fixed_abs, tag = 'smem constant byte address 0x4 - core index']
  #allocation1 [shape = 'u32[144,128]{1,0:T(1,128)}', space=vmem, size = 0x12000, scoped, tag = 'internal scratch']
  %s0 = inlined_call_operand.vmem [shape: f32[2,8,256], index: 0, kind: input, shape index: {}]
  %s1 = inlined_call_operand.vmem [shape: f32[4,8], index: 1, kind: input, shape index: {}]
  %s2 = inlined_call_operand.vmem [shape: f32[4,1], index: 2, kind: input, shape index: {}]
  %s3 = inlined_call_operand.vmem [shape: f32[8,4], index: 3, kind: input, shape index: {}]
  %s4 = inlined_call_operand.vmem [shape: f32[8,1], index: 4, kind: input, shape index: {}]
  %s5 = inlined_call_operand.vmem [shape: f32[2,8,256], index: 5, kind: output, shape index: {}]
  %s6 = sld [smem:[#allocation0]]
  $region53: #{channel_se_layer_3d.1} parent=0
    _
  %s8 = ssub.s32 1, %s6
  %s9 = scalar_select 0, %s8, %s6
  loop: start=0, step=1, limit=4
  $region2: #{channel_se_layer_3d.1} parent=0 // loop_pre_header
    _
  $region3: #{channel_se_layer_3d.1} parent=0 // loop_header
    %s11 = sphi 0, %s15
    %p12 = scmp.ge.s32.totalorder %s11, 4
    %s21 = sphi 0, %s23
    %s24 = sphi 0, %s21
    %s25 = sphi 0, %s24
    %s41 = sphi 0, %s25
    %s45 = sphi 0, %s45
    %s47 = sphi 0, %s45
    %s48 = sphi 0, %s47
    %s62 = sphi 0, %s48
    %s66 = sphi 0, %s66
    %s68 = sphi 0, %s66
    %s69 = sphi 0, %s68
    %s83 = sphi 0, %s69
    %s87 = sphi 0, %s87
    %s89 = sphi 0, %s87
    %s90 = sphi 0, %s89
    %s104 = sphi 0, %s90
    %s108 = sphi 0, %s108
    %s110 = sphi 0, %s108
    %s111 = sphi 0, %s110
    %s125 = sphi 0, %s111
    %s131 = sphi 0, %s133
    %s134 = sphi 0, %s131
    %s135 = sphi 0, %s134
    %s151 = sphi 0, %s135
  $region4: #{channel_se_layer_3d.1} parent=0 // loop_header_branch
    %14 = sbr.rel (%p12) target = $region8
  $region5: #{channel_se_layer_3d.1} parent=0 // loop_body
    %s16 = ssub.s32 %s11, 1
    %s17 = ssub.s32 %s11, 2
    %s18 = sadd.s32 %s11, 1
    %s19 = ssub.s32 %s11, %s18
    %p20 = scmp.eq.s32.totalorder %s19, 0
    %s22 = sadd.s32 %s21, 1
    %s23 = scalar_select %p20, %s21, %s22
    %p26 = pneg %p20
    %p27 = scmp.eq.s32.totalorder %s11, 1
    %p28 = por %p26, %p27
    %p29 = scmp.ne.s32.totalorder %s21, %s24
    %p30 = scmp.eq.s32.totalorder %s11, 0
    %p31 = por %p29, %p30
    %p32 = scmp.ne.s32.totalorder %s21, %s24
    %p33 = scmp.eq.s32.totalorder %s16, 1
    %p34 = por %p32, %p33
    %p35 = scmp.ne.s32.totalorder %s24, %s25
    %p36 = scmp.eq.s32.totalorder %s16, 0
    %p37 = por %p35, %p36
    %p38 = scmp.ne.s32.totalorder %s24, %s25
    %p39 = scmp.eq.s32.totalorder %s17, 1
    %p40 = por %p38, %p39
    %p42 = scmp.ne.s32.totalorder %s25, %s41
    %p43 = scmp.eq.s32.totalorder %s17, 0
    %p44 = por %p42, %p43
    %s46 = sadd.s32 %s45, 1
    %p49 = scmp.eq.s32.totalorder %s11, 1
    %p50 = scmp.ne.s32.totalorder %s45, %s47
    %p51 = scmp.eq.s32.totalorder %s11, 0
    %p52 = por %p50, %p51
    %p53 = scmp.ne.s32.totalorder %s45, %s47
    %p54 = scmp.eq.s32.totalorder %s16, 1
    %p55 = por %p53, %p54
    %p56 = scmp.ne.s32.totalorder %s47, %s48
    %p57 = scmp.eq.s32.totalorder %s16, 0
    %p58 = por %p56, %p57
    %p59 = scmp.ne.s32.totalorder %s47, %s48
    %p60 = scmp.eq.s32.totalorder %s17, 1
    %p61 = por %p59, %p60
    %p63 = scmp.ne.s32.totalorder %s48, %s62
    %p64 = scmp.eq.s32.totalorder %s17, 0
    %p65 = por %p63, %p64
    %s67 = sadd.s32 %s66, 1
    %p70 = scmp.eq.s32.totalorder %s11, 1
    %p71 = scmp.ne.s32.totalorder %s66, %s68
    %p72 = scmp.eq.s32.totalorder %s11, 0
    %p73 = por %p71, %p72
    %p74 = scmp.ne.s32.totalorder %s66, %s68
    %p75 = scmp.eq.s32.totalorder %s16, 1
    %p76 = por %p74, %p75
    %p77 = scmp.ne.s32.totalorder %s68, %s69
    %p78 = scmp.eq.s32.totalorder %s16, 0
    %p79 = por %p77, %p78
    %p80 = scmp.ne.s32.totalorder %s68, %s69
    %p81 = scmp.eq.s32.totalorder %s17, 1
    %p82 = por %p80, %p81
    %p84 = scmp.ne.s32.totalorder %s69, %s83
    %p85 = scmp.eq.s32.totalorder %s17, 0
    %p86 = por %p84, %p85
    %s88 = sadd.s32 %s87, 1
    %p91 = scmp.eq.s32.totalorder %s11, 1
    %p92 = scmp.ne.s32.totalorder %s87, %s89
    %p93 = scmp.eq.s32.totalorder %s11, 0
    %p94 = por %p92, %p93
    %p95 = scmp.ne.s32.totalorder %s87, %s89
    %p96 = scmp.eq.s32.totalorder %s16, 1
    %p97 = por %p95, %p96
    %p98 = scmp.ne.s32.totalorder %s89, %s90
    %p99 = scmp.eq.s32.totalorder %s16, 0
    %p100 = por %p98, %p99
    %p101 = scmp.ne.s32.totalorder %s89, %s90
    %p102 = scmp.eq.s32.totalorder %s17, 1
    %p103 = por %p101, %p102
    %p105 = scmp.ne.s32.totalorder %s90, %s104
    %p106 = scmp.eq.s32.totalorder %s17, 0
    %p107 = por %p105, %p106
    %s109 = sadd.s32 %s108, 1
    %p112 = scmp.eq.s32.totalorder %s11, 1
    %p113 = scmp.ne.s32.totalorder %s108, %s110
    %p114 = scmp.eq.s32.totalorder %s11, 0
    %p115 = por %p113, %p114
    %p116 = scmp.ne.s32.totalorder %s108, %s110
    %p117 = scmp.eq.s32.totalorder %s16, 1
    %p118 = por %p116, %p117
    %p119 = scmp.ne.s32.totalorder %s110, %s111
    %p120 = scmp.eq.s32.totalorder %s16, 0
    %p121 = por %p119, %p120
    %p122 = scmp.ne.s32.totalorder %s110, %s111
    %p123 = scmp.eq.s32.totalorder %s17, 1
    %p124 = por %p122, %p123
    %p126 = scmp.ne.s32.totalorder %s111, %s125
    %p127 = scmp.eq.s32.totalorder %s17, 0
    %p128 = por %p126, %p127
    %s129 = ssub.s32 %s11, %s18
    %p130 = scmp.eq.s32.totalorder %s129, 0
    %s132 = sadd.s32 %s131, 1
    %s133 = scalar_select %p130, %s131, %s132
    %p136 = pneg %p130
    %p137 = scmp.eq.s32.totalorder %s11, 1
    %p138 = por %p136, %p137
    %p139 = scmp.ne.s32.totalorder %s131, %s134
    %p140 = scmp.eq.s32.totalorder %s11, 0
    %p141 = por %p139, %p140
    %p142 = scmp.ne.s32.totalorder %s131, %s134
    %p143 = scmp.eq.s32.totalorder %s16, 1
    %p144 = por %p142, %p143
    %p145 = scmp.ne.s32.totalorder %s134, %s135
    %p146 = scmp.eq.s32.totalorder %s16, 0
    %p147 = por %p145, %p146
    %p148 = scmp.ne.s32.totalorder %s134, %s135
    %p149 = scmp.eq.s32.totalorder %s17, 1
    %p150 = por %p148, %p149
    %p152 = scmp.ne.s32.totalorder %s135, %s151
    %p153 = scmp.eq.s32.totalorder %s17, 0
    %p154 = por %p152, %p153
    %p155 = scmp.le.s32.totalorder 1, %s11
    %p156 = scmp.lt.s32.totalorder %s11, 3
    %p157 = pnand %p155, %p156
    %p158 = pneg %p157
    // Predicated region
    $region9: #{channel_se_layer_3d.1} parent=5 // pred_check
      _
    $region10: #{channel_se_layer_3d.1} parent=5 // pred_check_branch
      %160 = sbr.rel (%p157) target = $region12
    $region11: #{channel_se_layer_3d.1} parent=5 // pred_region
      %s161 = ssub.s32 %s11, 1
      // Predicated region
      $region13: #{channel_se_layer_3d.1} parent=11 // pred_check
        %p162 = pneg %p58
      $region14: #{channel_se_layer_3d.1} parent=11 // pred_check_branch
        %164 = sbr.rel (%p162) target = $region16
      $region15: #{channel_se_layer_3d.1} parent=11 // pred_region
        _
      $region16: #{channel_se_layer_3d.1} parent=11 // pred_fallthru
        _
      // Predicated region
      $region17: #{channel_se_layer_3d.1} parent=11 // pred_check
        %p165 = pneg %p79
      $region18: #{channel_se_layer_3d.1} parent=11 // pred_check_branch
        %167 = sbr.rel (%p165) target = $region20
      $region19: #{channel_se_layer_3d.1} parent=11 // pred_region
        _
      $region20: #{channel_se_layer_3d.1} parent=11 // pred_fallthru
        _
      // Predicated region
      $region21: #{channel_se_layer_3d.1} parent=11 // pred_check
        %p168 = pneg %p100
      $region22: #{channel_se_layer_3d.1} parent=11 // pred_check_branch
        %170 = sbr.rel (%p168) target = $region24
      $region23: #{channel_se_layer_3d.1} parent=11 // pred_region
        _
      $region24: #{channel_se_layer_3d.1} parent=11 // pred_fallthru
        _
      // Predicated region
      $region25: #{channel_se_layer_3d.1} parent=11 // pred_check
        %p171 = pneg %p121
      $region26: #{channel_se_layer_3d.1} parent=11 // pred_check_branch
        %173 = sbr.rel (%p171) target = $region28
      $region27: #{channel_se_layer_3d.1} parent=11 // pred_region
        _
      $region28: #{channel_se_layer_3d.1} parent=11 // pred_fallthru
        _
    $region12: #{channel_se_layer_3d.1} parent=5 // pred_fallthru
      _
    %p174 = scmp.lt.s32.totalorder %s11, 2
    // Predicated region
    $region29: #{channel_se_layer_3d.1} parent=5 // pred_check
      %p175 = pneg %p174
    $region30: #{channel_se_layer_3d.1} parent=5 // pred_check_branch
      %177 = sbr.rel (%p175) target = $region32
    $region31: #{channel_se_layer_3d.1} parent=5 // pred_region
      // Predicated region
      $region33: #{channel_se_layer_3d.1} parent=31 // pred_check
        %p178 = pneg %p31
      $region34: #{channel_se_layer_3d.1} parent=31 // pred_check_branch
        %180 = sbr.rel (%p178) target = $region36
      $region35: #{channel_se_layer_3d.1} parent=31 // pred_region
        %p181 = scmp.lt.s32.totalorder %s11, 1
        %s182 = scalar_select %p181, %s11, 1
        %s183 = smul.addr %s182, 2
        %s184 = smul.addr %s183, 8
        %s185 = scalar_lea.vmem %s0, %s184
      $region36: #{channel_se_layer_3d.1} parent=31 // pred_fallthru
        _
    $region32: #{channel_se_layer_3d.1} parent=5 // pred_fallthru
      _
    %p186 = scmp.le.s32.totalorder 1, %s11
    %p187 = scmp.lt.s32.totalorder %s11, 3
    %p188 = pnand %p186, %p187
    %p189 = pneg %p188
    // Predicated region
    $region37: #{channel_se_layer_3d.1} parent=5 // pred_check
      _
    $region38: #{channel_se_layer_3d.1} parent=5 // pred_check_branch
      %191 = sbr.rel (%p188) target = $region40
    $region39: #{channel_se_layer_3d.1} parent=5 // pred_region
      %s192 = ssub.s32 %s11, 1
      %p193 = scmp.lt.s32.totalorder %s16, 1
      %s194 = scalar_select %p193, %s16, 1
      %s195 = smul.addr %s194, 2
      %s196 = smul.addr %s195, 8
      %s197 = scalar_lea.vmem %s0, %s196
      %p198 = pneg %p37
      %p199 = pneg %p34
      %p200 = pneg %p58
      %p201 = pneg %p55
      %p202 = pneg %p79
      %p203 = pneg %p76
      %p204 = pneg %p100
      %p205 = pneg %p97
      %p206 = pneg %p121
      %p207 = pneg %p118
      %p208 = pneg %p147
      %p209 = pneg %p144
      %p210 = scmp.lt.s32.totalorder %s16, 1
      %s211 = scalar_select %p210, %s16, 1
      %s212 = smul.addr %s211, 2
      %s213 = smul.addr %s212, 8
      %s214 = scalar_lea.vmem %s5, %s213
      %p215 = scmp.lt.s32.totalorder %s16, 1
      %s216 = scalar_select %p215, %s16, 1
      %s217 = smul.addr %s216, 2
      %s218 = smul.addr %s217, 8
      %s219 = scalar_lea.vmem %s0, %s218
      %p220 = scmp.lt.s32.totalorder %s16, 1
      %s221 = scalar_select %p220, %s16, 1
      %s222 = smul.addr %s221, 2
      %s223 = smul.addr %s222, 8
      %s224 = scalar_lea.vmem %s5, %s223
      %v225 = vld [vmem:[%s219] sm:$0xff]
      %v226 = vld [vmem:[%s219 + $0x8] sm:$0xff]
      %v227 = vadd.f32 %v225, %v226
      %228 = vadd.xlane.f32.xlu0 %v227
      %v229 = vpop.xlane.xlu0 %228
      %v230 = vmul.f32 %v229, 0.00390625
      %v231 = vld [vmem:[%s1] sm:$0xf]
      %v232 = vld [vmem:[%s2] sm:$0xf]
      %vm233 = vcmask 64512
      %v235 = vsel %vm233, %v231, 0
      %237 = vmatprep.subr.mxu0 0.0
      %238 = vmatpush1.msra.mxu0 0.0
      %239 = vmatprep.subr.mxu0 0.0
      %240 = vmatpush1.msra.mxu0 0.0
      %241 = vmatprep.subr.mxu0 0.0
      %242 = vmatpush1.msra.mxu0 0.0
      %243 = vmatprep.subr.mxu0 0.0
      %244 = vmatpush1.msra.mxu0 0.0
      %245 = vmatprep.subr.mxu0 0.0
      %246 = vmatpush1.msra.mxu0 0.0
      %247 = vmatprep.subr.mxu0 0.0
      %248 = vmatpush1.msra.mxu0 0.0
      %249 = vmatprep.subr.mxu0 0.0
      %250 = vmatpush1.msra.mxu0 0.0
      %251 = vmatprep.subr.mxu0 0.0
      %252 = vmatpush1.msra.mxu0 0.0
      %253 = vmatprep.subr.mxu0 0.0
      %254 = vmatpush1.msra.mxu0 0.0
      %255 = vmatprep.subr.mxu0 0.0
      %256 = vmatpush1.msra.mxu0 0.0
      %257 = vmatprep.subr.mxu0 0.0
      %258 = vmatpush1.msra.mxu0 0.0
      %259 = vmatprep.subr.mxu0 0.0
      %260 = vmatpush1.msra.mxu0 0.0
      %261 = vmatprep.subr.mxu0 0.0
      %262 = vmatpush1.msra.mxu0 0.0
      %263 = vmatprep.subr.mxu0 0.0
      %264 = vmatpush1.msra.mxu0 0.0
      %265 = vmatprep.subr.mxu0 0.0
      %266 = vmatpush1.msra.mxu0 0.0
      %267 = vmatprep.subr.mxu0 0.0
      %268 = vmatpush1.msra.mxu0 %v230
      %269 = vmatprep.subr.mxu0 0.0
      %270 = vmatpush2.msra.mxu0 0.0
      %271 = vmatprep.subr.mxu0 0.0
      %272 = vmatpush2.msra.mxu0 0.0
      %273 = vmatprep.subr.mxu0 0.0
      %274 = vmatpush2.msra.mxu0 0.0
      %275 = vmatprep.subr.mxu0 0.0
      %276 = vmatpush2.msra.mxu0 0.0
      %277 = vmatprep.subr.mxu0 0.0
      %278 = vmatpush2.msra.mxu0 0.0
      %279 = vmatprep.subr.mxu0 0.0
      %280 = vmatpush2.msra.mxu0 0.0
      %281 = vmatprep.subr.mxu0 0.0
      %282 = vmatpush2.msra.mxu0 0.0
      %283 = vmatprep.subr.mxu0 0.0
      %284 = vmatpush2.msra.mxu0 0.0
      %285 = vmatprep.subr.mxu0 0.0
      %286 = vmatpush2.msra.mxu0 0.0
      %287 = vmatprep.subr.mxu0 0.0
      %288 = vmatpush2.msra.mxu0 0.0
      %289 = vmatprep.subr.mxu0 0.0
      %290 = vmatpush2.msra.mxu0 0.0
      %291 = vmatprep.subr.mxu0 0.0
      %292 = vmatpush2.msra.mxu0 0.0
      %293 = vmatprep.subr.mxu0 0.0
      %294 = vmatpush2.msra.mxu0 0.0
      %295 = vmatprep.subr.mxu0 0.0
      %296 = vmatpush2.msra.mxu0 0.0
      %297 = vmatprep.subr.mxu0 0.0
      %298 = vmatpush2.msra.mxu0 0.0
      %299 = vmatprep.subr.mxu0 0.0
      %300 = vmatpush2.msra.mxu0 0.0
      %301 = vmatprep.mubr.f32.mxu0 0.0
      %302 = vmatmul.mubr.f32.gmra.mxu0 %v235
      %v303 = vpop.f32.mrf.mxu0
      %v304 = vadd.f32 %v232, %v303
      %v305 = vpop.f32.mrf.mxu0
      %306 = vdwg.mxu0
      %v307 = vmax.f32 %v304, 0.0
      %v308 = vld [vmem:[%s3] sm:$0xff]
      %v309 = vld [vmem:[%s4] sm:$0xff]
      %vm310 = vcmask 31744
      %v312 = vsel %vm310, %v308, 0
      %vm314 = vcmask 1043456
      %v316 = vsel %vm314, %v307, 0
      %318 = vmatprep.subr.mxu0 0.0
      %319 = vmatpush1.msra.mxu0 0.0
      %320 = vmatprep.subr.mxu0 0.0
      %321 = vmatpush1.msra.mxu0 0.0
      %322 = vmatprep.subr.mxu0 0.0
      %323 = vmatpush1.msra.mxu0 0.0
      %324 = vmatprep.subr.mxu0 0.0
      %325 = vmatpush1.msra.mxu0 0.0
      %326 = vmatprep.subr.mxu0 0.0
      %327 = vmatpush1.msra.mxu0 0.0
      %328 = vmatprep.subr.mxu0 0.0
      %329 = vmatpush1.msra.mxu0 0.0
      %330 = vmatprep.subr.mxu0 0.0
      %331 = vmatpush1.msra.mxu0 0.0
      %332 = vmatprep.subr.mxu0 0.0
      %333 = vmatpush1.msra.mxu0 0.0
      %334 = vmatprep.subr.mxu0 0.0
      %335 = vmatpush1.msra.mxu0 0.0
      %336 = vmatprep.subr.mxu0 0.0
      %337 = vmatpush1.msra.mxu0 0.0
      %338 = vmatprep.subr.mxu0 0.0
      %339 = vmatpush1.msra.mxu0 0.0
      %340 = vmatprep.subr.mxu0 0.0
      %341 = vmatpush1.msra.mxu0 0.0
      %342 = vmatprep.subr.mxu0 0.0
      %343 = vmatpush1.msra.mxu0 0.0
      %344 = vmatprep.subr.mxu0 0.0
      %345 = vmatpush1.msra.mxu0 0.0
      %346 = vmatprep.subr.mxu0 0.0
      %347 = vmatpush1.msra.mxu0 0.0
      %348 = vmatprep.subr.mxu0 0.0
      %349 = vmatpush1.msra.mxu0 %v316
      %350 = vmatprep.subr.mxu0 0.0
      %351 = vmatpush2.msra.mxu0 0.0
      %352 = vmatprep.subr.mxu0 0.0
      %353 = vmatpush2.msra.mxu0 0.0
      %354 = vmatprep.subr.mxu0 0.0
      %355 = vmatpush2.msra.mxu0 0.0
      %356 = vmatprep.subr.mxu0 0.0
      %357 = vmatpush2.msra.mxu0 0.0
      %358 = vmatprep.subr.mxu0 0.0
      %359 = vmatpush2.msra.mxu0 0.0
      %360 = vmatprep.subr.mxu0 0.0
      %361 = vmatpush2.msra.mxu0 0.0
      %362 = vmatprep.subr.mxu0 0.0
      %363 = vmatpush2.msra.mxu0 0.0
      %364 = vmatprep.subr.mxu0 0.0
      %365 = vmatpush2.msra.mxu0 0.0
      %366 = vmatprep.subr.mxu0 0.0
      %367 = vmatpush2.msra.mxu0 0.0
      %368 = vmatprep.subr.mxu0 0.0
      %369 = vmatpush2.msra.mxu0 0.0
      %370 = vmatprep.subr.mxu0 0.0
      %371 = vmatpush2.msra.mxu0 0.0
      %372 = vmatprep.subr.mxu0 0.0
      %373 = vmatpush2.msra.mxu0 0.0
      %374 = vmatprep.subr.mxu0 0.0
      %375 = vmatpush2.msra.mxu0 0.0
      %376 = vmatprep.subr.mxu0 0.0
      %377 = vmatpush2.msra.mxu0 0.0
      %378 = vmatprep.subr.mxu0 0.0
      %379 = vmatpush2.msra.mxu0 0.0
      %380 = vmatprep.subr.mxu0 0.0
      %381 = vmatpush2.msra.mxu0 0.0
      %382 = vmatprep.mubr.f32.mxu0 0.0
      %383 = vmatmul.mubr.f32.gmra.mxu0 %v312
      %v384 = vpop.f32.mrf.mxu0
      %v385 = vadd.f32 %v309, %v384
      %v386 = vpop.f32.mrf.mxu0
      %387 = vdwg.mxu0
      %v388 = vxor.u32 %v385, 2147483648
      %v389 = vmul.f32 %v388, 1.442695
      %v390 = vpow.pop %v389
      %v391 = vadd.f32 %v390, 1.0
      %v392 = vrcp.pop %v391
      %v393 = vmul.f32 1.0, %v392
      %395 = vset.pattern.permute.xlu0 0
      %396 = vperm.xlu0 %395, %v393
      %v397 = vpop.permute.xlu0 %396
      %v399 = vmul.f32 %v225, %v397
      %v400 = vmul.f32 %v226, %v397
      %401 = vst [vmem:[%s224] sm:$0xff] %v399
      %402 = vst [vmem:[%s224 + $0x8] sm:$0xff] %v400
      %p403 = scmp.lt.s32.totalorder %s16, 1
      %s404 = scalar_select %p403, %s16, 1
      %s405 = smul.addr %s404, 2
      %s406 = smul.addr %s405, 8
      %s407 = scalar_lea.vmem %s5, %s406
      // Predicated region
      $region41: #{channel_se_layer_3d.1} parent=39 // pred_check
        %p408 = pneg %p144
      $region42: #{channel_se_layer_3d.1} parent=39 // pred_check_branch
        %410 = sbr.rel (%p408) target = $region44
      $region43: #{channel_se_layer_3d.1} parent=39 // pred_region
        _
      $region44: #{channel_se_layer_3d.1} parent=39 // pred_fallthru
        _
    $region40: #{channel_se_layer_3d.1} parent=5 // pred_fallthru
      _
    %p411 = scmp.le.s32.totalorder 2, %s11
    // Predicated region
    $region45: #{channel_se_layer_3d.1} parent=5 // pred_check
      %p412 = pneg %p411
    $region46: #{channel_se_layer_3d.1} parent=5 // pred_check_branch
      %414 = sbr.rel (%p412) target = $region48
    $region47: #{channel_se_layer_3d.1} parent=5 // pred_region
      %s415 = ssub.s32 %s11, 2
      // Predicated region
      $region49: #{channel_se_layer_3d.1} parent=47 // pred_check
        %p416 = pneg %p150
      $region50: #{channel_se_layer_3d.1} parent=47 // pred_check_branch
        %418 = sbr.rel (%p416) target = $region52
      $region51: #{channel_se_layer_3d.1} parent=47 // pred_region
        %p419 = scmp.lt.s32.totalorder %s17, 1
        %s420 = scalar_select %p419, %s17, 1
        %s421 = smul.addr %s420, 2
        %s422 = smul.addr %s421, 8
        %s423 = scalar_lea.vmem %s5, %s422
      $region52: #{channel_se_layer_3d.1} parent=47 // pred_fallthru
        _
    $region48: #{channel_se_layer_3d.1} parent=5 // pred_fallthru
      _
  $region6: #{channel_se_layer_3d.1} parent=0 // loop_footer
    %s15 = sadd.s32 1, %s11
  $region7: #{channel_se_layer_3d.1} parent=0 // loop_footer_branch
    %10 = sbr.rel target = $region3
  $region8: #{channel_se_layer_3d.1} parent=0 // loop_exit
    _

</llo_original>
